<compile_context>
chip_gen: v6e
topology: v6e:2x2x1
jax: 0.10.0
libtpu: 0.0.40
codegen_flags: <defaults>
</compile_context>

<pallas_src>
import jax
import jax.numpy as jnp
from jax.experimental import pallas as pl
from jax.experimental.pallas import tpu as pltpu


def _copy_kernel(x_ref, o_ref):
    # One lane-dense tile of the flattened tensor: straight VMEM copy.
    o_ref[...] = x_ref[...]


def _tpu_kind():
    try:
        return jax.devices()[0].device_kind.lower()
    except Exception:
        return ""


def _device_budgets(kind):
    """(per-tile byte budget, vmem_limit_bytes) per TPU generation."""
    if "v7" in kind:
        # 64 MiB physical VMEM: keep the 4x-tile double-buffered working set
        # (in + out) well under the 32 MiB scoped limit.
        return 4 * 1024 * 1024, 32 * 1024 * 1024
    # v5e / v6e: 128 MiB physical VMEM -> bigger tiles, fewer grid steps.
    return 8 * 1024 * 1024, 64 * 1024 * 1024


def _divisor_tile(dim, unit, max_tile):
    """Largest t <= max_tile with t % unit == 0 and dim % t == 0, or None."""
    if dim <= 0 or dim % unit != 0:
        return None
    t = min(dim, (max_tile // unit) * unit)
    while t >= unit:
        if dim % t == 0:
            return t
        t -= unit
    return None


def _sublane_unit(itemsize):
    # Sub-32-bit dtypes pack along sublanes: bf16 -> 16 rows/vreg, int8 -> 32.
    return {4: 8, 2: 16, 1: 32}.get(itemsize, 8)


def _choose_tiles(B, N, itemsize, budget):
    """Budget-driven (TB, TN): lane axis multiple of 128 (or full N), sublane
    axis a dtype-aware multiple (or full B), TB*TN*itemsize <= budget whenever
    a legal tiling allows it."""
    sub_unit = _sublane_unit(itemsize)

    # Minimal legal sublane block (full extent when B is not aligned).
    tb_min = sub_unit if (B >= sub_unit and B % sub_unit == 0) else B

    # Prefer full flattened rows: fully contiguous HBM DMA per block.
    if tb_min * N * itemsize <= budget:
        tn = N
        max_tb = max(tb_min, budget // (N * itemsize))
        tb = _divisor_tile(B, sub_unit, max_tb) if B % sub_unit == 0 else B
        if tb is None:
            tb = tb_min
        return tb, tn

    # Full rows don't fit: keep TB minimal and split the lane axis.
    tb = tb_min
    max_tn = max(128, budget // max(1, tb * itemsize))
    tn = _divisor_tile(N, 128, max_tn)
    if tn is None:
        tn = N  # N not 128-aligned: full extent is the only legal block.
    return tb, tn


def fatten_forward(x):
    """x: (B, ...) -> (B, prod(rest)); identical to torch's x.view(B, -1)."""
    B = x.shape[0]
    N = 1
    for d in x.shape[1:]:
        N *= d
    # Row-major flatten: metadata-only in XLA, matches .view() on a contiguous
    # tensor exactly.
    x2 = x.reshape(B, N)
    if B == 0 or N == 0:
        return x2

    itemsize = jnp.dtype(x.dtype).itemsize
    kind = _tpu_kind()
    budget, vmem_limit = _device_budgets(kind)
    TB, TN = _choose_tiles(B, N, itemsize, budget)

    # Pathological untileable shape (B not sublane-aligned AND N not
    # lane-aligned, array bigger than the working-set budget): the reshape
    # alone is already the exact answer, so skip the copy rather than OOM VMEM.
    if 4 * TB * TN * itemsize > vmem_limit:
        return x2

    # v7x megacore: make sure there are >= 2 parallel grid steps so both
    # TensorCores share this bandwidth-bound copy (neutral on v5e/v6e).
    if "v7" in kind and (B // TB) * (N // TN) < 2 and B * N * itemsize > (1 << 20):
        sub_unit = _sublane_unit(itemsize)
        new_tb = (_divisor_tile(B, sub_unit, max(sub_unit, TB // 2))
                  if B % sub_unit == 0 else None)
        if new_tb is not None and new_tb < TB:
            TB = new_tb
        elif N % 128 == 0:
            new_tn = _divisor_tile(N, 128, max(128, TN // 2))
            if new_tn is not None and new_tn < TN:
                TN = new_tn

    grid = (B // TB, N // TN)
    return pl.pallas_call(
        _copy_kernel,
        out_shape=jax.ShapeDtypeStruct((B, N), x.dtype),
        grid=grid,
        in_specs=[pl.BlockSpec((TB, TN), lambda i, j: (i, j))],
        out_specs=pl.BlockSpec((TB, TN), lambda i, j: (i, j)),
        compiler_params=pltpu.CompilerParams(
            dimension_semantics=("parallel", "parallel"),
            vmem_limit_bytes=vmem_limit,
        ),
        # Pure memory traffic: zero flops, 2*B*N*itemsize bytes moved.
        cost_estimate=pl.CostEstimate(
            flops=0, transcendentals=0, bytes_accessed=2 * B * N * itemsize),
    )(x2)


if __name__ == "__main__":
    B, C, H, W = 2, 4, 16, 16
    key = jax.random.PRNGKey(0)
    x = jax.random.normal(key, (B, C, H, W), jnp.float32)

    out = jax.block_until_ready(fatten_forward(x))

    ref = jnp.reshape(x, (B, C * H * W))      # torch .view(B, -1) reference
    assert out.shape == (B, C * H * W), out.shape
    assert out.dtype == x.dtype
    assert bool(jnp.all(out == ref))
    print("KERNEL_OK")
</pallas_src>

<mosaic_0001>
module attributes {stable_mosaic.version = 11 : i64} {
  func.func @_copy_kernel(%arg0: i32, %arg1: i32, %arg2: memref<2x1024xf32, #tpu.memory_space<vmem>>, %arg3: memref<2x1024xf32, #tpu.memory_space<vmem>>) attributes {dimension_semantics = [#tpu.dimension_semantics<parallel>, #tpu.dimension_semantics<parallel>], iteration_bounds = array<i64: 1, 1>, scalar_prefetch = 0 : i64, scratch_operands = 0 : i64, tpu.core_type = #tpu.core_type<tc>, window_params = [{transform_indices = @transform_0, window_bounds = array<i64: 2, 1024>}, {transform_indices = @transform_1, window_bounds = array<i64: 2, 1024>}]} {
    %c0 = arith.constant 0 : index
    %c0_0 = arith.constant 0 : index
    %0 = vector.load %arg2[%c0, %c0_0] : memref<2x1024xf32, #tpu.memory_space<vmem>>, vector<2x1024xf32>
    %c0_1 = arith.constant 0 : index
    %c0_2 = arith.constant 0 : index
    %1 = vector.load %arg3[%c0_1, %c0_2] : memref<2x1024xf32, #tpu.memory_space<vmem>>, vector<2x1024xf32>
    tpu.vector_store %arg3[%c0_1, %c0_2], %0 {strides = array<i32>} : memref<2x1024xf32, #tpu.memory_space<vmem>>, vector<2x1024xf32>,
    return
  }
  func.func @transform_0(%arg0: i32, %arg1: i32) -> (i32, i32) {
    %c0_i32 = arith.constant 0 : i32
    return %arg0, %arg1 : i32, i32
  }
  func.func @transform_1(%arg0: i32, %arg1: i32) -> (i32, i32) {
    %c0_i32 = arith.constant 0 : i32
    return %arg0, %arg1 : i32, i32
  }
}

</mosaic_0001>

<llo_original>
// kernel: tpu_custom_call.1
$region0: #{tpu_custom_call.1}
  #allocation0 [shape = 'u32[]', space=smem, size = 0x4, offset = 0x4, fixed_abs, tag = 'smem constant byte address 0x4 - core index']
  #allocation1 [shape = 'u32[144,128]{1,0:T(1,128)}', space=vmem, size = 0x12000, scoped, tag = 'internal scratch']
  %s0 = inlined_call_operand.hbm [shape: f32[2,1024], index: 0, kind: input, shape index: {}]
  %s1 = inlined_call_operand.hbm [shape: f32[2,1024], index: 1, kind: output, shape index: {}]
  %s2 = sld [smem:[#allocation0]]
  $region18: #{tpu_custom_call.1} parent=0
    _
  %s4 = ssub.s32 1, %s2
  %s5 = scalar_select 0, %s4, %s2
  $region1: #{tpu_custom_call.1} parent=0
    #allocation2 [shape = 'u8[8192]{0}', space=vmem, size = 0x2000, scoped, tag = 'input window, operand 0, single buffered']
    #allocation3 [shape = 's32[1]{0}', space=sflag, size = 0x4, scoped, tag = 'scoped memory for tpu_custom_call.1']
    #allocation4 [shape = 's32[1]{0}', space=sflag, size = 0x4, scoped, tag = 'scoped memory for tpu_custom_call.1']
    #allocation5 [shape = 'u8[8192]{0}', space=vmem, size = 0x2000, scoped, tag = 'output window, operand 0, single buffered']
    %6 = vsyncpa [#allocation3], 0
    %7 = vsyncpa [#allocation4], 0
    // Predicated region
    $region2: #{tpu_custom_call.1} parent=1 // pred_check
      _
    $region3: #{tpu_custom_call.1} parent=1 // pred_check_branch
      %9 = sbr.rel (0) target = $region5
    $region4: #{tpu_custom_call.1} parent=1 // pred_region
      %s11 = ssub.s32 256, 256
      %12 = vsyncadd [#allocation3], %s11
      %s14 = sshll.u32 [#allocation2], 4
      %s15 = int_to_ptr.vmem [resolvable:$true] %s14
      %17 = dma.hbm_to_vmem [thread:$0]  %s0, 256, %s15, [#allocation3]
    $region5: #{tpu_custom_call.1} parent=1 // pred_fallthru
      _
    // Predicated region
    $region6: #{tpu_custom_call.1} parent=1 // pred_check
      _
    $region7: #{tpu_custom_call.1} parent=1 // pred_check_branch
      %19 = sbr.rel (0) target = $region9
    $region8: #{tpu_custom_call.1} parent=1 // pred_region
      %20 = dma.done [#allocation3], 256
    $region9: #{tpu_custom_call.1} parent=1 // pred_fallthru
      _
    %v21 = vld [vmem:[#allocation2] sm:$0xff]
    %v22 = vld [vmem:[#allocation2 + $0x8] sm:$0xff]
    %23 = vst [vmem:[#allocation5] sm:$0xff] %v21
    %24 = vst [vmem:[#allocation5 + $0x8] sm:$0xff] %v22
    // Predicated region
    $region10: #{tpu_custom_call.1} parent=1 // pred_check
      _
    $region11: #{tpu_custom_call.1} parent=1 // pred_check_branch
      %26 = sbr.rel (0) target = $region13
    $region12: #{tpu_custom_call.1} parent=1 // pred_region
      %s28 = ssub.s32 256, 256
      %29 = vsyncadd [#allocation4], %s28
      %s31 = sshll.u32 [#allocation5], 4
      %s32 = int_to_ptr.vmem [resolvable:$true] %s31
      %34 = dma.vmem_to_hbm [thread:$0]  %s32, 256, %s1, [#allocation4]
    $region13: #{tpu_custom_call.1} parent=1 // pred_fallthru
      _
    // Predicated region
    $region14: #{tpu_custom_call.1} parent=1 // pred_check
      _
    $region15: #{tpu_custom_call.1} parent=1 // pred_check_branch
      %36 = sbr.rel (0) target = $region17
    $region16: #{tpu_custom_call.1} parent=1 // pred_region
      %37 = dma.done [#allocation4], 256
    $region17: #{tpu_custom_call.1} parent=1 // pred_fallthru
      _
    %38 = vsyncpa [#allocation3], 1
    %39 = vsyncpa [#allocation4], 1

</llo_original>
